<compile_context>
chip_gen: v7x
topology: tpu7x:2x2x1
jax: 0.10.0
libtpu: 0.0.40
codegen_flags: <defaults>
</compile_context>

<pallas_src>
import functools

import jax
import jax.numpy as jnp
from jax import lax
from jax.experimental import pallas as pl
from jax.experimental.pallas import tpu as pltpu


def _dropout_bits(seed_i32, layer, tile_i32, block_m, shape):
    """Counter-based uint32 random bits for one (block_m, d) tile of one layer.

    Pure VPU integer ops (xor/shift/mul) -> works on TPU and in interpret mode,
    and is deterministic per (seed, layer, global element position).
    """
    row = lax.broadcasted_iota(jnp.uint32, shape, 0)
    col = lax.broadcasted_iota(jnp.uint32, shape, 1)
    # global row index so different batch tiles get different streams
    grow = row + (tile_i32 * block_m).astype(jnp.uint32)
    seed_u = seed_i32.astype(jnp.uint32)

    h = (grow * jnp.uint32(0x9E3779B1)) ^ (col * jnp.uint32(0x85EBCA77))
    h = h ^ (seed_u + jnp.uint32(layer) * jnp.uint32(0xC2B2AE3D))
    # murmur3 fmix32 finalizer
    h = h ^ (h >> jnp.uint32(16))
    h = h * jnp.uint32(0x85EBCA6B)
    h = h ^ (h >> jnp.uint32(13))
    h = h * jnp.uint32(0xC2B2AE35)
    h = h ^ (h >> jnp.uint32(16))
    return h


def _fused_mlp_kernel(seed_ref, x_ref, *refs, p, n_layers, block_m):
    """seed_ref: (1,) i32 scalar-prefetch; x_ref: (block_m, d_in);
    refs = (w0, ..., w_{n-1}, o_ref); w_i: (d_in_i, d_out_i) bf16 VMEM-resident."""
    w_refs = refs[:n_layers]
    o_ref = refs[n_layers]

    tile = pl.program_id(0)
    seed = seed_ref[0]

    if p > 0.0:
        threshold = jnp.uint32(min(int(round(p * (1 << 32))), (1 << 32) - 1))
        scale = jnp.float32(1.0 / (1.0 - p))

    h = x_ref[...].astype(jnp.float32)
    for layer, w_ref in enumerate(w_refs):
        # bf16 operands, f32 accumulate on the MXU.
        y = jnp.dot(h.astype(jnp.bfloat16), w_ref[...],
                    preferred_element_type=jnp.float32)
        y = jnp.maximum(y, jnp.float32(0.0))          # ReLU (f32 on VPU)
        if p > 0.0:
            bits = _dropout_bits(seed, layer, tile, block_m, y.shape)
            keep = bits >= threshold                  # integer-threshold compare
            y = jnp.where(keep, y * scale, jnp.float32(0.0))
        h = y

    o_ref[...] = h.astype(o_ref.dtype)


def projection_head_forward(x, weights_t, p=0.1, seed=0, block_m=8):
    """Replicates ProjectionHead.forward: for each layer -> Linear(no bias), ReLU, Dropout.

    x: (B, d_in) f32.  weights_t: list of (in, out) bf16 arrays (pre-transposed).
    """
    B, d_in = x.shape
    n_layers = len(weights_t)
    d_out = weights_t[-1].shape[1]
    assert B % block_m == 0, "batch must be a multiple of block_m"
    grid = (B // block_m,)

    in_specs = [pl.BlockSpec((block_m, d_in), lambda i, s: (i, 0))]
    for w in weights_t:
        # full-array block, constant index_map -> stays VMEM-resident across tiles
        in_specs.append(pl.BlockSpec(w.shape, lambda i, s: (0, 0)))
    out_spec = pl.BlockSpec((block_m, d_out), lambda i, s: (i, 0))

    seed_arr = jnp.array([seed], dtype=jnp.int32)

    return pl.pallas_call(
        functools.partial(_fused_mlp_kernel, p=p, n_layers=n_layers,
                          block_m=block_m),
        out_shape=jax.ShapeDtypeStruct((B, d_out), jnp.float32),
        grid_spec=pltpu.PrefetchScalarGridSpec(
            num_scalar_prefetch=1,
            grid=grid,
            in_specs=in_specs,
            out_specs=out_spec,
        ),
        compiler_params=pltpu.CompilerParams(
            dimension_semantics=("parallel",),   # batch tiles -> both TCs on v7x
        ),
    )(seed_arr, x, *weights_t)


def init_projection_head_params(key, d_in, d_out, d_hidden, n_layers):
    """nn.Linear(bias=False)-style init, but stored pre-transposed (in, out)
    and cast to bf16 once at init (no per-forward transpose / cast)."""
    dims = [(d_in, d_hidden)] + [(d_hidden, d_hidden)] * (n_layers - 2) + [(d_hidden, d_out)]
    weights = []
    for fan_in, fan_out in dims:
        key, sub = jax.random.split(key)
        bound = 1.0 / float(fan_in) ** 0.5
        w = jax.random.uniform(sub, (fan_in, fan_out), jnp.float32, -bound, bound)
        weights.append(w.astype(jnp.bfloat16))
    return weights


def _reference_forward_no_dropout(x, weights_t):
    """Pure-JAX reference (p=0): bf16 operands, f32 accumulate, ReLU."""
    h = x.astype(jnp.float32)
    for w in weights_t:
        h = jnp.dot(h.astype(jnp.bfloat16), w, preferred_element_type=jnp.float32)
        h = jnp.maximum(h, 0.0)
    return h


if __name__ == "__main__":
    # Small, TPU-layout-friendly shapes (feature dims multiples of 128, batch
    # tiled in multiples of 8 sublanes).
    B, D_IN, D_HIDDEN, D_OUT, N_LAYERS = 16, 128, 128, 128, 3
    DROPOUT_P = 0.1
    BLOCK_M = 8

    key = jax.random.PRNGKey(0)
    kx, kw = jax.random.split(key)
    x = jax.random.normal(kx, (B, D_IN), dtype=jnp.float32)
    weights = init_projection_head_params(kw, D_IN, D_OUT, D_HIDDEN, N_LAYERS)

    # 1) correctness check against a pure-JAX reference with dropout off
    out_nodrop = projection_head_forward(x, weights, p=0.0, seed=0, block_m=BLOCK_M)
    out_nodrop = jax.block_until_ready(out_nodrop)
    ref = _reference_forward_no_dropout(x, weights)
    assert out_nodrop.shape == (B, D_OUT), out_nodrop.shape
    assert jnp.allclose(out_nodrop, ref, rtol=2e-2, atol=2e-2), "mismatch vs reference"

    # 2) training-mode forward with dropout enabled
    out = projection_head_forward(x, weights, p=DROPOUT_P, seed=42, block_m=BLOCK_M)
    out = jax.block_until_ready(out)
    assert out.shape == (B, D_OUT), out.shape
    assert jnp.all(jnp.isfinite(out))

    print("KERNEL_OK")
</pallas_src>

<mosaic_0001>
module attributes {stable_mosaic.version = 11 : i64} {
  func.func @_fused_mlp_kernel(%arg0: i32, %arg1: memref<1xi32, #tpu.memory_space<smem>>, %arg2: memref<8x128xf32, #tpu.memory_space<vmem>>, %arg3: memref<128x128xbf16, #tpu.memory_space<vmem>>, %arg4: memref<128x128xbf16, #tpu.memory_space<vmem>>, %arg5: memref<128x128xbf16, #tpu.memory_space<vmem>>, %arg6: memref<8x128xf32, #tpu.memory_space<vmem>>) attributes {dimension_semantics = [#tpu.dimension_semantics<parallel>], iteration_bounds = array<i64: 2>, scalar_prefetch = 1 : i64, scratch_operands = 0 : i64, tpu.core_type = #tpu.core_type<tc>, window_params = [{transform_indices = @transform_0, window_bounds = array<i64: 8, 128>}, {pipeline_mode = #tpu.pipeline_mode<synchronous>, transform_indices = @transform_1, window_bounds = array<i64: 128, 128>}, {pipeline_mode = #tpu.pipeline_mode<synchronous>, transform_indices = @transform_2, window_bounds = array<i64: 128, 128>}, {pipeline_mode = #tpu.pipeline_mode<synchronous>, transform_indices = @transform_3, window_bounds = array<i64: 128, 128>}, {transform_indices = @transform_4, window_bounds = array<i64: 8, 128>}]} {
    %c0 = arith.constant 0 : index
    %c0_0 = arith.constant 0 : index
    %0 = vector.load %arg2[%c0, %c0_0] : memref<8x128xf32, #tpu.memory_space<vmem>>, vector<8x128xf32>
    %1 = arith.truncf %0 : vector<8x128xf32> to vector<8x128xbf16>
    %c0_1 = arith.constant 0 : index
    %c0_2 = arith.constant 0 : index
    %2 = vector.load %arg3[%c0_1, %c0_2] : memref<128x128xbf16, #tpu.memory_space<vmem>>, vector<128x128xbf16>
    %cst = arith.constant dense<0.000000e+00> : vector<8x128xf32>
    %3 = tpu.matmul %1, %2, %cst {dimension_numbers = #tpu.dot_dimension_numbers<[1], [0], [0], [1], [0, 0, 1, 1], [], []>} : vector<8x128xbf16>, vector<128x128xbf16>, vector<8x128xf32> -> vector<8x128xf32>
    %cst_3 = arith.constant 0.000000e+00 : f32
    %4 = vector.broadcast %cst_3 : f32 to vector<8x128xf32>
    %5 = arith.maximumf %3, %4 : vector<8x128xf32>
    %6 = arith.truncf %5 : vector<8x128xf32> to vector<8x128xbf16>
    %c0_4 = arith.constant 0 : index
    %c0_5 = arith.constant 0 : index
    %7 = vector.load %arg4[%c0_4, %c0_5] : memref<128x128xbf16, #tpu.memory_space<vmem>>, vector<128x128xbf16>
    %cst_6 = arith.constant dense<0.000000e+00> : vector<8x128xf32>
    %8 = tpu.matmul %6, %7, %cst_6 {dimension_numbers = #tpu.dot_dimension_numbers<[1], [0], [0], [1], [0, 0, 1, 1], [], []>} : vector<8x128xbf16>, vector<128x128xbf16>, vector<8x128xf32> -> vector<8x128xf32>
    %cst_7 = arith.constant 0.000000e+00 : f32
    %9 = vector.broadcast %cst_7 : f32 to vector<8x128xf32>
    %10 = arith.maximumf %8, %9 : vector<8x128xf32>
    %11 = arith.truncf %10 : vector<8x128xf32> to vector<8x128xbf16>
    %c0_8 = arith.constant 0 : index
    %c0_9 = arith.constant 0 : index
    %12 = vector.load %arg5[%c0_8, %c0_9] : memref<128x128xbf16, #tpu.memory_space<vmem>>, vector<128x128xbf16>
    %cst_10 = arith.constant dense<0.000000e+00> : vector<8x128xf32>
    %13 = tpu.matmul %11, %12, %cst_10 {dimension_numbers = #tpu.dot_dimension_numbers<[1], [0], [0], [1], [0, 0, 1, 1], [], []>} : vector<8x128xbf16>, vector<128x128xbf16>, vector<8x128xf32> -> vector<8x128xf32>
    %cst_11 = arith.constant 0.000000e+00 : f32
    %14 = vector.broadcast %cst_11 : f32 to vector<8x128xf32>
    %15 = arith.maximumf %13, %14 : vector<8x128xf32>
    %c0_12 = arith.constant 0 : index
    %c0_13 = arith.constant 0 : index
    %16 = vector.load %arg6[%c0_12, %c0_13] : memref<8x128xf32, #tpu.memory_space<vmem>>, vector<8x128xf32>
    tpu.vector_store %arg6[%c0_12, %c0_13], %15 {strides = array<i32>} : memref<8x128xf32, #tpu.memory_space<vmem>>, vector<8x128xf32>,
    return
  }
  func.func @transform_0(%arg0: i32, %arg1: memref<1xi32, #tpu.memory_space<smem>>) -> (i32, i32) {
    %c0_i32 = arith.constant 0 : i32
    %c0_i32_0 = arith.constant 0 : i32
    return %arg0, %c0_i32 : i32, i32
  }
  func.func @transform_1(%arg0: i32, %arg1: memref<1xi32, #tpu.memory_space<smem>>) -> (i32, i32) {
    %c0_i32 = arith.constant 0 : i32
    %c0_i32_0 = arith.constant 0 : i32
    %c0_i32_1 = arith.constant 0 : i32
    return %c0_i32, %c0_i32_0 : i32, i32
  }
  func.func @transform_2(%arg0: i32, %arg1: memref<1xi32, #tpu.memory_space<smem>>) -> (i32, i32) {
    %c0_i32 = arith.constant 0 : i32
    %c0_i32_0 = arith.constant 0 : i32
    %c0_i32_1 = arith.constant 0 : i32
    return %c0_i32, %c0_i32_0 : i32, i32
  }
  func.func @transform_3(%arg0: i32, %arg1: memref<1xi32, #tpu.memory_space<smem>>) -> (i32, i32) {
    %c0_i32 = arith.constant 0 : i32
    %c0_i32_0 = arith.constant 0 : i32
    %c0_i32_1 = arith.constant 0 : i32
    return %c0_i32, %c0_i32_0 : i32, i32
  }
  func.func @transform_4(%arg0: i32, %arg1: memref<1xi32, #tpu.memory_space<smem>>) -> (i32, i32) {
    %c0_i32 = arith.constant 0 : i32
    %c0_i32_0 = arith.constant 0 : i32
    return %arg0, %c0_i32 : i32, i32
  }
}

</mosaic_0001>

<llo_original>
// kernel: tpu_custom_call.1
$region0: #{tpu_custom_call.1}
  #allocation0 [shape = 'u32[]', space=smem, size = 0x4, offset = 0x4, fixed_abs, tag = 'smem constant byte address 0x4 - core index']
  #allocation1 [shape = 'u32[144,128]{1,0:T(1,128)}', space=vmem, size = 0x12000, scoped, tag = 'internal scratch']
  #allocation2 [shape = 's32[1]{0}', space=sflag, size = 0x4, scoped, tag = 'scoped memory for tpu_custom_call.1']
  #allocation3 [shape = 's32[1]{0:T(128)S(6)}', space=smem, size = 0x200, scoped, tag = 'prefetched SMEM operand 0']
  %s0 = inlined_call_operand.<no memory space> [shape: s32[1], index: 0, kind: input, shape index: {}]
  %s1 = inlined_call_operand.hbm [shape: f32[16,128], index: 1, kind: input, shape index: {}]
  %s2 = inlined_call_operand.hbm [shape: bf16[128,128], index: 2, kind: input, shape index: {}]
  %s3 = inlined_call_operand.hbm [shape: bf16[128,128], index: 3, kind: input, shape index: {}]
  %s4 = inlined_call_operand.hbm [shape: bf16[128,128], index: 4, kind: input, shape index: {}]
  %s5 = inlined_call_operand.hbm [shape: f32[16,128], index: 5, kind: output, shape index: {}]
  %s6 = sld [smem:[#allocation0]]
  $region65: #{tpu_custom_call.1} parent=0
    _
  %s8 = ssub.s32 1, %s6
  %s9 = scalar_select 0, %s8, %s6
  %10 = sst [smem:[#allocation3]] %s0
  $region1: #{tpu_custom_call.1} parent=0
    #allocation4 [shape = 'u8[8192]{0}', space=vmem, size = 0x2000, scoped, tag = 'input window, operand 1']
    #allocation5 [shape = 's32[2]{0}', space=sflag, size = 0x8, scoped, tag = 'scoped memory for tpu_custom_call.1']
    #allocation6 [shape = 's32[2]{0}', space=sflag, size = 0x8, scoped, tag = 'scoped memory for tpu_custom_call.1']
    #allocation7 [shape = 'u8[32768]{0}', space=vmem, size = 0x8000, scoped, tag = 'input window, operand 2, single buffered']
    #allocation8 [shape = 's32[1]{0}', space=sflag, size = 0x4, scoped, tag = 'scoped memory for tpu_custom_call.1']
    #allocation9 [shape = 'u8[32768]{0}', space=vmem, size = 0x8000, scoped, tag = 'input window, operand 3, single buffered']
    #allocation10 [shape = 'u8[32768]{0}', space=vmem, size = 0x8000, scoped, tag = 'input window, operand 4, single buffered']
    #allocation11 [shape = 's32[1]{0}', space=sflag, size = 0x4, scoped, tag = 'scoped memory for tpu_custom_call.1']
    #allocation12 [shape = 'u8[8192]{0}', space=vmem, size = 0x2000, scoped, tag = 'output window, operand 0']
    %11 = vsyncpa [#allocation5], 0
    %s12 = scalar_lea.sflag [#allocation5], 1
    %13 = vsyncpa %s12, 0
    %14 = vsyncpa [#allocation8], 0
    %15 = vsyncpa [#allocation11], 0
    %16 = vsyncpa [#allocation6], 0
    %s17 = scalar_lea.sflag [#allocation6], 1
    %18 = vsyncpa %s17, 0
    loop: start=0, step=1, limit=4
    $region2: #{tpu_custom_call.1} parent=1 // loop_pre_header
      _
    $region3: #{tpu_custom_call.1} parent=1 // loop_header
      %s20 = sphi 0, %s24
      %p21 = scmp.ge.s32.totalorder %s20, 4
      %s30 = sphi 0, %s32
      %s33 = sphi 0, %s30
      %s34 = sphi 0, %s33
      %s50 = sphi 0, %s34
      %s54 = sphi 0, %s54
      %s56 = sphi 0, %s54
      %s57 = sphi 0, %s56
      %s71 = sphi 0, %s57
      %s75 = sphi 0, %s75
      %s77 = sphi 0, %s75
      %s78 = sphi 0, %s77
      %s92 = sphi 0, %s78
      %s96 = sphi 0, %s96
      %s98 = sphi 0, %s96
      %s99 = sphi 0, %s98
      %s113 = sphi 0, %s99
      %s119 = sphi 0, %s121
      %s122 = sphi 0, %s119
      %s123 = sphi 0, %s122
      %s139 = sphi 0, %s123
    $region4: #{tpu_custom_call.1} parent=1 // loop_header_branch
      %23 = sbr.rel (%p21) target = $region8
    $region5: #{tpu_custom_call.1} parent=1 // loop_body
      %s25 = ssub.s32 %s20, 1
      %s26 = ssub.s32 %s20, 2
      %s27 = sadd.s32 %s20, 1
      %s28 = ssub.s32 %s20, %s27
      %p29 = scmp.eq.s32.totalorder %s28, 0
      %s31 = sadd.s32 %s30, 1
      %s32 = scalar_select %p29, %s30, %s31
      %p35 = pneg %p29
      %p36 = scmp.eq.s32.totalorder %s20, 1
      %p37 = por %p35, %p36
      %p38 = scmp.ne.s32.totalorder %s30, %s33
      %p39 = scmp.eq.s32.totalorder %s20, 0
      %p40 = por %p38, %p39
      %p41 = scmp.ne.s32.totalorder %s30, %s33
      %p42 = scmp.eq.s32.totalorder %s25, 1
      %p43 = por %p41, %p42
      %p44 = scmp.ne.s32.totalorder %s33, %s34
      %p45 = scmp.eq.s32.totalorder %s25, 0
      %p46 = por %p44, %p45
      %p47 = scmp.ne.s32.totalorder %s33, %s34
      %p48 = scmp.eq.s32.totalorder %s26, 1
      %p49 = por %p47, %p48
      %p51 = scmp.ne.s32.totalorder %s34, %s50
      %p52 = scmp.eq.s32.totalorder %s26, 0
      %p53 = por %p51, %p52
      %s55 = sadd.s32 %s54, 1
      %p58 = scmp.eq.s32.totalorder %s20, 1
      %p59 = scmp.ne.s32.totalorder %s54, %s56
      %p60 = scmp.eq.s32.totalorder %s20, 0
      %p61 = por %p59, %p60
      %p62 = scmp.ne.s32.totalorder %s54, %s56
      %p63 = scmp.eq.s32.totalorder %s25, 1
      %p64 = por %p62, %p63
      %p65 = scmp.ne.s32.totalorder %s56, %s57
      %p66 = scmp.eq.s32.totalorder %s25, 0
      %p67 = por %p65, %p66
      %p68 = scmp.ne.s32.totalorder %s56, %s57
      %p69 = scmp.eq.s32.totalorder %s26, 1
      %p70 = por %p68, %p69
      %p72 = scmp.ne.s32.totalorder %s57, %s71
      %p73 = scmp.eq.s32.totalorder %s26, 0
      %p74 = por %p72, %p73
      %s76 = sadd.s32 %s75, 1
      %p79 = scmp.eq.s32.totalorder %s20, 1
      %p80 = scmp.ne.s32.totalorder %s75, %s77
      %p81 = scmp.eq.s32.totalorder %s20, 0
      %p82 = por %p80, %p81
      %p83 = scmp.ne.s32.totalorder %s75, %s77
      %p84 = scmp.eq.s32.totalorder %s25, 1
      %p85 = por %p83, %p84
      %p86 = scmp.ne.s32.totalorder %s77, %s78
      %p87 = scmp.eq.s32.totalorder %s25, 0
      %p88 = por %p86, %p87
      %p89 = scmp.ne.s32.totalorder %s77, %s78
      %p90 = scmp.eq.s32.totalorder %s26, 1
      %p91 = por %p89, %p90
      %p93 = scmp.ne.s32.totalorder %s78, %s92
      %p94 = scmp.eq.s32.totalorder %s26, 0
      %p95 = por %p93, %p94
      %s97 = sadd.s32 %s96, 1
      %p100 = scmp.eq.s32.totalorder %s20, 1
      %p101 = scmp.ne.s32.totalorder %s96, %s98
      %p102 = scmp.eq.s32.totalorder %s20, 0
      %p103 = por %p101, %p102
      %p104 = scmp.ne.s32.totalorder %s96, %s98
      %p105 = scmp.eq.s32.totalorder %s25, 1
      %p106 = por %p104, %p105
      %p107 = scmp.ne.s32.totalorder %s98, %s99
      %p108 = scmp.eq.s32.totalorder %s25, 0
      %p109 = por %p107, %p108
      %p110 = scmp.ne.s32.totalorder %s98, %s99
      %p111 = scmp.eq.s32.totalorder %s26, 1
      %p112 = por %p110, %p111
      %p114 = scmp.ne.s32.totalorder %s99, %s113
      %p115 = scmp.eq.s32.totalorder %s26, 0
      %p116 = por %p114, %p115
      %s117 = ssub.s32 %s20, %s27
      %p118 = scmp.eq.s32.totalorder %s117, 0
      %s120 = sadd.s32 %s119, 1
      %s121 = scalar_select %p118, %s119, %s120
      %p124 = pneg %p118
      %p125 = scmp.eq.s32.totalorder %s20, 1
      %p126 = por %p124, %p125
      %p127 = scmp.ne.s32.totalorder %s119, %s122
      %p128 = scmp.eq.s32.totalorder %s20, 0
      %p129 = por %p127, %p128
      %p130 = scmp.ne.s32.totalorder %s119, %s122
      %p131 = scmp.eq.s32.totalorder %s25, 1
      %p132 = por %p130, %p131
      %p133 = scmp.ne.s32.totalorder %s122, %s123
      %p134 = scmp.eq.s32.totalorder %s25, 0
      %p135 = por %p133, %p134
      %p136 = scmp.ne.s32.totalorder %s122, %s123
      %p137 = scmp.eq.s32.totalorder %s26, 1
      %p138 = por %p136, %p137
      %p140 = scmp.ne.s32.totalorder %s123, %s139
      %p141 = scmp.eq.s32.totalorder %s26, 0
      %p142 = por %p140, %p141
      %p143 = scmp.le.s32.totalorder 1, %s20
      %p144 = scmp.lt.s32.totalorder %s20, 3
      %p145 = pnand %p143, %p144
      %p146 = pneg %p145
      // Predicated region
      $region9: #{tpu_custom_call.1} parent=5 // pred_check
        _
      $region10: #{tpu_custom_call.1} parent=5 // pred_check_branch
        %148 = sbr.rel (%p145) target = $region12
      $region11: #{tpu_custom_call.1} parent=5 // pred_region
        %s149 = ssub.s32 %s20, 1
        // Predicated region
        $region13: #{tpu_custom_call.1} parent=11 // pred_check
          %p150 = pneg %p67
        $region14: #{tpu_custom_call.1} parent=11 // pred_check_branch
          %152 = sbr.rel (%p150) target = $region16
        $region15: #{tpu_custom_call.1} parent=11 // pred_region
          %s154 = ssub.s32 1024, 1024
          %155 = vsyncadd [#allocation8], %s154
          %s156 = sshll.u32 [#allocation7], 4
          %s157 = int_to_ptr.vmem [resolvable:$true] %s156
          %162 = dma.hbm_to_vmem [thread:$0]  %s2, 1024, %s157, [#allocation8], 64, 64, 4
        $region16: #{tpu_custom_call.1} parent=11 // pred_fallthru
          _
        // Predicated region
        $region17: #{tpu_custom_call.1} parent=11 // pred_check
          %p163 = pneg %p88
        $region18: #{tpu_custom_call.1} parent=11 // pred_check_branch
          %165 = sbr.rel (%p163) target = $region20
        $region19: #{tpu_custom_call.1} parent=11 // pred_region
          %s167 = ssub.s32 1024, 1024
          %168 = vsyncadd [#allocation8], %s167
          %s169 = sshll.u32 [#allocation9], 4
          %s170 = int_to_ptr.vmem [resolvable:$true] %s169
          %175 = dma.hbm_to_vmem [thread:$0]  %s3, 1024, %s170, [#allocation8], 64, 64, 4
        $region20: #{tpu_custom_call.1} parent=11 // pred_fallthru
          _
        // Predicated region
        $region21: #{tpu_custom_call.1} parent=11 // pred_check
          %p176 = pneg %p109
        $region22: #{tpu_custom_call.1} parent=11 // pred_check_branch
          %178 = sbr.rel (%p176) target = $region24
        $region23: #{tpu_custom_call.1} parent=11 // pred_region
          %s180 = ssub.s32 1024, 1024
          %181 = vsyncadd [#allocation11], %s180
          %s182 = sshll.u32 [#allocation10], 4
          %s183 = int_to_ptr.vmem [resolvable:$true] %s182
          %188 = dma.hbm_to_vmem [thread:$0]  %s4, 1024, %s183, [#allocation11], 64, 64, 4
        $region24: #{tpu_custom_call.1} parent=11 // pred_fallthru
          _
      $region12: #{tpu_custom_call.1} parent=5 // pred_fallthru
        _
      %p189 = scmp.lt.s32.totalorder %s20, 2
      // Predicated region
      $region25: #{tpu_custom_call.1} parent=5 // pred_check
        %p190 = pneg %p189
      $region26: #{tpu_custom_call.1} parent=5 // pred_check_branch
        %192 = sbr.rel (%p190) target = $region28
      $region27: #{tpu_custom_call.1} parent=5 // pred_region
        // Predicated region
        $region29: #{tpu_custom_call.1} parent=27 // pred_check
          %p193 = pneg %p40
        $region30: #{tpu_custom_call.1} parent=27 // pred_check_branch
          %195 = sbr.rel (%p193) target = $region32
        $region31: #{tpu_custom_call.1} parent=27 // pred_region
          %s196 = sand.u32 %s30, 1
          %s197 = scalar_lea.sflag [#allocation5], %s196
          %s198 = sand.u32 %s30, 1
          %s199 = smul.addr %s198, 8
          %s200 = scalar_lea.vmem [#allocation4], %s199
          %s202 = ssub.s32 128, 128
          %203 = vsyncadd %s197, %s202
          %s204 = smul.addr %s20, 128
          %s205 = scalar_lea.hbm %s1, %s204
          %s207 = sshll.u32 %s200, 4
          %s208 = int_to_ptr.vmem [resolvable:$true] %s207
          %210 = dma.hbm_to_vmem [thread:$0]  %s205, 128, %s208, %s197
        $region32: #{tpu_custom_call.1} parent=27 // pred_fallthru
          _
      $region28: #{tpu_custom_call.1} parent=5 // pred_fallthru
        _
      %p211 = scmp.le.s32.totalorder 1, %s20
      %p212 = scmp.lt.s32.totalorder %s20, 3
      %p213 = pnand %p211, %p212
      %p214 = pneg %p213
      // Predicated region
      $region33: #{tpu_custom_call.1} parent=5 // pred_check
        _
      $region34: #{tpu_custom_call.1} parent=5 // pred_check_branch
        %216 = sbr.rel (%p213) target = $region36
      $region35: #{tpu_custom_call.1} parent=5 // pred_region
        %s217 = ssub.s32 %s20, 1
        %s218 = sand.u32 %s33, 1
        %s219 = scalar_lea.sflag [#allocation5], %s218
        %s220 = sand.u32 %s33, 1
        %s221 = smul.addr %s220, 8
        %s222 = scalar_lea.vmem [#allocation4], %s221
        // Predicated region
        $region37: #{tpu_custom_call.1} parent=35 // pred_check
          %p223 = pneg %p46
        $region38: #{tpu_custom_call.1} parent=35 // pred_check_branch
          %225 = sbr.rel (%p223) target = $region40
        $region39: #{tpu_custom_call.1} parent=35 // pred_region
          %226 = dma.done %s219, 128
        $region40: #{tpu_custom_call.1} parent=35 // pred_fallthru
          _
        // Predicated region
        $region41: #{tpu_custom_call.1} parent=35 // pred_check
          %p227 = pneg %p67
        $region42: #{tpu_custom_call.1} parent=35 // pred_check_branch
          %229 = sbr.rel (%p227) target = $region44
        $region43: #{tpu_custom_call.1} parent=35 // pred_region
          %230 = dma.done [#allocation8], 1024
        $region44: #{tpu_custom_call.1} parent=35 // pred_fallthru
          _
        // Predicated region
        $region45: #{tpu_custom_call.1} parent=35 // pred_check
          %p231 = pneg %p88
        $region46: #{tpu_custom_call.1} parent=35 // pred_check_branch
          %233 = sbr.rel (%p231) target = $region48
        $region47: #{tpu_custom_call.1} parent=35 // pred_region
          %234 = dma.done [#allocation8], 1024
        $region48: #{tpu_custom_call.1} parent=35 // pred_fallthru
          _
        // Predicated region
        $region49: #{tpu_custom_call.1} parent=35 // pred_check
          %p235 = pneg %p109
        $region50: #{tpu_custom_call.1} parent=35 // pred_check_branch
          %237 = sbr.rel (%p235) target = $region52
        $region51: #{tpu_custom_call.1} parent=35 // pred_region
          %238 = dma.done [#allocation11], 1024
        $region52: #{tpu_custom_call.1} parent=35 // pred_fallthru
          _
        %s239 = sand.u32 %s33, 1
        %s240 = scalar_lea.sflag [#allocation5], %s239
        %s241 = sand.u32 %s33, 1
        %s242 = smul.addr %s241, 8
        %s243 = scalar_lea.vmem [#allocation4], %s242
        %p244 = pneg %p46
        %p245 = pneg %p43
        %p246 = pneg %p67
        %p247 = pneg %p64
        %p248 = pneg %p88
        %p249 = pneg %p85
        %p250 = pneg %p109
        %p251 = pneg %p106
        %p252 = pneg %p135
        %p253 = pneg %p132
        %s254 = sand.u32 %s122, 1
        %s255 = scalar_lea.sflag [#allocation6], %s254
        %s256 = sand.u32 %s122, 1
        %s257 = smul.addr %s256, 8
        %s258 = scalar_lea.vmem [#allocation12], %s257
        %v260 = vld [vmem:[%s222] sm:$0xff]
        %v261 = vpack.c.bf16 %v260, %v260
        %v262 = vld [vmem:[#allocation7] sm:$0xf]
        %v263 = vld [vmem:[#allocation7 + $0x4] sm:$0xf]
        %v264 = vld [vmem:[#allocation7 + $0x8] sm:$0xf]
        %v265 = vld [vmem:[#allocation7 + $0xc] sm:$0xf]
        %v266 = vld [vmem:[#allocation7 + $0x10] sm:$0xf]
        %v267 = vld [vmem:[#allocation7 + $0x14] sm:$0xf]
        %v268 = vld [vmem:[#allocation7 + $0x18] sm:$0xf]
        %v269 = vld [vmem:[#allocation7 + $0x1c] sm:$0xf]
        %v270 = vld [vmem:[#allocation7 + $0x20] sm:$0xf]
        %v271 = vld [vmem:[#allocation7 + $0x24] sm:$0xf]
        %v272 = vld [vmem:[#allocation7 + $0x28] sm:$0xf]
        %v273 = vld [vmem:[#allocation7 + $0x2c] sm:$0xf]
        %v274 = vld [vmem:[#allocation7 + $0x30] sm:$0xf]
        %v275 = vld [vmem:[#allocation7 + $0x34] sm:$0xf]
        %v276 = vld [vmem:[#allocation7 + $0x38] sm:$0xf]
        %v277 = vld [vmem:[#allocation7 + $0x3c] sm:$0xf]
        %v294 = vunpack.c.l.b16 %v262
        %v295 = vunpack.c.l.b16 %v263
        %v296 = vunpack.c.l.b16 %v264
        %v297 = vunpack.c.l.b16 %v265
        %v298 = vunpack.c.l.b16 %v266
        %v299 = vunpack.c.l.b16 %v267
        %v300 = vunpack.c.l.b16 %v268
        %v301 = vunpack.c.l.b16 %v269
        %v302 = vunpack.c.l.b16 %v270
        %v303 = vunpack.c.l.b16 %v271
        %v304 = vunpack.c.l.b16 %v272
        %v305 = vunpack.c.l.b16 %v273
        %v306 = vunpack.c.l.b16 %v274
        %v307 = vunpack.c.l.b16 %v275
        %v308 = vunpack.c.l.b16 %v276
        %v309 = vunpack.c.l.b16 %v277
        %v310 = vpack.c.b16 %v295, %v294
        %v311 = vpack.c.b16 %v297, %v296
        %v312 = vpack.c.b16 %v299, %v298
        %v313 = vpack.c.b16 %v301, %v300
        %v314 = vpack.c.b16 %v303, %v302
        %v315 = vpack.c.b16 %v305, %v304
        %v316 = vpack.c.b16 %v307, %v306
        %v317 = vpack.c.b16 %v309, %v308
        %326 = vmatprep.subr.bf16.mxu0 0
        %327 = vmatpush1.bf16.msra.mxu0 %v310
        %328 = vmatprep.subr.bf16.mxu0 0
        %329 = vmatpush1.bf16.msra.mxu0 %v311
        %330 = vmatprep.subr.bf16.mxu0 0
        %331 = vmatpush1.bf16.msra.mxu0 %v312
        %332 = vmatprep.subr.bf16.mxu0 0
        %333 = vmatpush1.bf16.msra.mxu0 %v313
        %334 = vmatprep.subr.bf16.mxu0 0
        %335 = vmatpush1.bf16.msra.mxu0 %v314
        %336 = vmatprep.subr.bf16.mxu0 0
        %337 = vmatpush1.bf16.msra.mxu0 %v315
        %338 = vmatprep.subr.bf16.mxu0 0
        %339 = vmatpush1.bf16.msra.mxu0 %v316
        %340 = vmatprep.subr.bf16.mxu0 0
        %341 = vmatpush1.bf16.msra.mxu0 %v317
        %342 = vmatprep.subr.bf16.mxu0 0
        %343 = vmatpush1.bf16.msra.mxu0 0
        %344 = vmatprep.subr.bf16.mxu0 0
        %345 = vmatpush1.bf16.msra.mxu0 0
        %346 = vmatprep.subr.bf16.mxu0 0
        %347 = vmatpush1.bf16.msra.mxu0 0
        %348 = vmatprep.subr.bf16.mxu0 0
        %349 = vmatpush1.bf16.msra.mxu0 0
        %350 = vmatprep.subr.bf16.mxu0 0
        %351 = vmatpush1.bf16.msra.mxu0 0
        %352 = vmatprep.subr.bf16.mxu0 0
        %353 = vmatpush1.bf16.msra.mxu0 0
        %354 = vmatprep.subr.bf16.mxu0 0
        %355 = vmatpush1.bf16.msra.mxu0 0
        %356 = vmatprep.subr.bf16.mxu0 0
        %357 = vmatpush1.bf16.msra.mxu0 0
        %358 = vmatprep.mubr.bf16.mxu0 0
        %359 = vmatmul.mubr.bf16.gmra.mrb[0].mxu0 %v261
        %v360 = vpop.f32.mrb[0].mxu0
        %v361 = vadd.f32 0.0, %v360
        %v362 = vpop.f32.mrb[0].mxu0
        %v363 = vpop.f32.mrb[0].mxu0
        %v364 = vpop.f32.mrb[0].mxu0
        %365 = vdwg.mxu0
        %v366 = vmax.f32 %v361, 0.0
        %v367 = vpack.c.bf16 %v366, %v366
        %v368 = vld [vmem:[#allocation9] sm:$0xf]
        %v369 = vld [vmem:[#allocation9 + $0x4] sm:$0xf]
        %v370 = vld [vmem:[#allocation9 + $0x8] sm:$0xf]
        %v371 = vld [vmem:[#allocation9 + $0xc] sm:$0xf]
        %v372 = vld [vmem:[#allocation9 + $0x10] sm:$0xf]
        %v373 = vld [vmem:[#allocation9 + $0x14] sm:$0xf]
        %v374 = vld [vmem:[#allocation9 + $0x18] sm:$0xf]
        %v375 = vld [vmem:[#allocation9 + $0x1c] sm:$0xf]
        %v376 = vld [vmem:[#allocation9 + $0x20] sm:$0xf]
        %v377 = vld [vmem:[#allocation9 + $0x24] sm:$0xf]
        %v378 = vld [vmem:[#allocation9 + $0x28] sm:$0xf]
        %v379 = vld [vmem:[#allocation9 + $0x2c] sm:$0xf]
        %v380 = vld [vmem:[#allocation9 + $0x30] sm:$0xf]
        %v381 = vld [vmem:[#allocation9 + $0x34] sm:$0xf]
        %v382 = vld [vmem:[#allocation9 + $0x38] sm:$0xf]
        %v383 = vld [vmem:[#allocation9 + $0x3c] sm:$0xf]
        %v400 = vunpack.c.l.b16 %v368
        %v401 = vunpack.c.l.b16 %v369
        %v402 = vunpack.c.l.b16 %v370
        %v403 = vunpack.c.l.b16 %v371
        %v404 = vunpack.c.l.b16 %v372
        %v405 = vunpack.c.l.b16 %v373
        %v406 = vunpack.c.l.b16 %v374
        %v407 = vunpack.c.l.b16 %v375
        %v408 = vunpack.c.l.b16 %v376
        %v409 = vunpack.c.l.b16 %v377
        %v410 = vunpack.c.l.b16 %v378
        %v411 = vunpack.c.l.b16 %v379
        %v412 = vunpack.c.l.b16 %v380
        %v413 = vunpack.c.l.b16 %v381
        %v414 = vunpack.c.l.b16 %v382
        %v415 = vunpack.c.l.b16 %v383
        %v416 = vpack.c.b16 %v401, %v400
        %v417 = vpack.c.b16 %v403, %v402
        %v418 = vpack.c.b16 %v405, %v404
        %v419 = vpack.c.b16 %v407, %v406
        %v420 = vpack.c.b16 %v409, %v408
        %v421 = vpack.c.b16 %v411, %v410
        %v422 = vpack.c.b16 %v413, %v412
        %v423 = vpack.c.b16 %v415, %v414
        %432 = vmatprep.subr.bf16.mxu0 0
        %433 = vmatpush1.bf16.msra.mxu0 %v416
        %434 = vmatprep.subr.bf16.mxu0 0
        %435 = vmatpush1.bf16.msra.mxu0 %v417
        %436 = vmatprep.subr.bf16.mxu0 0
        %437 = vmatpush1.bf16.msra.mxu0 %v418
        %438 = vmatprep.subr.bf16.mxu0 0
        %439 = vmatpush1.bf16.msra.mxu0 %v419
        %440 = vmatprep.subr.bf16.mxu0 0
        %441 = vmatpush1.bf16.msra.mxu0 %v420
        %442 = vmatprep.subr.bf16.mxu0 0
        %443 = vmatpush1.bf16.msra.mxu0 %v421
        %444 = vmatprep.subr.bf16.mxu0 0
        %445 = vmatpush1.bf16.msra.mxu0 %v422
        %446 = vmatprep.subr.bf16.mxu0 0
        %447 = vmatpush1.bf16.msra.mxu0 %v423
        %448 = vmatprep.subr.bf16.mxu0 0
        %449 = vmatpush1.bf16.msra.mxu0 0
        %450 = vmatprep.subr.bf16.mxu0 0
        %451 = vmatpush1.bf16.msra.mxu0 0
        %452 = vmatprep.subr.bf16.mxu0 0
        %453 = vmatpush1.bf16.msra.mxu0 0
        %454 = vmatprep.subr.bf16.mxu0 0
        %455 = vmatpush1.bf16.msra.mxu0 0
        %456 = vmatprep.subr.bf16.mxu0 0
        %457 = vmatpush1.bf16.msra.mxu0 0
        %458 = vmatprep.subr.bf16.mxu0 0
        %459 = vmatpush1.bf16.msra.mxu0 0
        %460 = vmatprep.subr.bf16.mxu0 0
        %461 = vmatpush1.bf16.msra.mxu0 0
        %462 = vmatprep.subr.bf16.mxu0 0
        %463 = vmatpush1.bf16.msra.mxu0 0
        %464 = vmatprep.mubr.bf16.mxu0 0
        %465 = vmatmul.mubr.bf16.gmra.mrb[0].mxu0 %v367
        %v466 = vpop.f32.mrb[0].mxu0
        %v467 = vadd.f32 0.0, %v466
        %v468 = vpop.f32.mrb[0].mxu0
        %v469 = vpop.f32.mrb[0].mxu0
        %v470 = vpop.f32.mrb[0].mxu0
        %471 = vdwg.mxu0
        %v472 = vmax.f32 %v467, 0.0
        %v473 = vpack.c.bf16 %v472, %v472
        %v474 = vld [vmem:[#allocation10] sm:$0xf]
        %v475 = vld [vmem:[#allocation10 + $0x4] sm:$0xf]
        %v476 = vld [vmem:[#allocation10 + $0x8] sm:$0xf]
        %v477 = vld [vmem:[#allocation10 + $0xc] sm:$0xf]
        %v478 = vld [vmem:[#allocation10 + $0x10] sm:$0xf]
        %v479 = vld [vmem:[#allocation10 + $0x14] sm:$0xf]
        %v480 = vld [vmem:[#allocation10 + $0x18] sm:$0xf]
        %v481 = vld [vmem:[#allocation10 + $0x1c] sm:$0xf]
        %v482 = vld [vmem:[#allocation10 + $0x20] sm:$0xf]
        %v483 = vld [vmem:[#allocation10 + $0x24] sm:$0xf]
        %v484 = vld [vmem:[#allocation10 + $0x28] sm:$0xf]
        %v485 = vld [vmem:[#allocation10 + $0x2c] sm:$0xf]
        %v486 = vld [vmem:[#allocation10 + $0x30] sm:$0xf]
        %v487 = vld [vmem:[#allocation10 + $0x34] sm:$0xf]
        %v488 = vld [vmem:[#allocation10 + $0x38] sm:$0xf]
        %v489 = vld [vmem:[#allocation10 + $0x3c] sm:$0xf]
        %v506 = vunpack.c.l.b16 %v474
        %v507 = vunpack.c.l.b16 %v475
        %v508 = vunpack.c.l.b16 %v476
        %v509 = vunpack.c.l.b16 %v477
        %v510 = vunpack.c.l.b16 %v478
        %v511 = vunpack.c.l.b16 %v479
        %v512 = vunpack.c.l.b16 %v480
        %v513 = vunpack.c.l.b16 %v481
        %v514 = vunpack.c.l.b16 %v482
        %v515 = vunpack.c.l.b16 %v483
        %v516 = vunpack.c.l.b16 %v484
        %v517 = vunpack.c.l.b16 %v485
        %v518 = vunpack.c.l.b16 %v486
        %v519 = vunpack.c.l.b16 %v487
        %v520 = vunpack.c.l.b16 %v488
        %v521 = vunpack.c.l.b16 %v489
        %v522 = vpack.c.b16 %v507, %v506
        %v523 = vpack.c.b16 %v509, %v508
        %v524 = vpack.c.b16 %v511, %v510
        %v525 = vpack.c.b16 %v513, %v512
        %v526 = vpack.c.b16 %v515, %v514
        %v527 = vpack.c.b16 %v517, %v516
        %v528 = vpack.c.b16 %v519, %v518
        %v529 = vpack.c.b16 %v521, %v520
        %538 = vmatprep.subr.bf16.mxu0 0
        %539 = vmatpush1.bf16.msra.mxu0 %v522
        %540 = vmatprep.subr.bf16.mxu0 0
        %541 = vmatpush1.bf16.msra.mxu0 %v523
        %542 = vmatprep.subr.bf16.mxu0 0
        %543 = vmatpush1.bf16.msra.mxu0 %v524
        %544 = vmatprep.subr.bf16.mxu0 0
        %545 = vmatpush1.bf16.msra.mxu0 %v525
        %546 = vmatprep.subr.bf16.mxu0 0
        %547 = vmatpush1.bf16.msra.mxu0 %v526
        %548 = vmatprep.subr.bf16.mxu0 0
        %549 = vmatpush1.bf16.msra.mxu0 %v527
        %550 = vmatprep.subr.bf16.mxu0 0
        %551 = vmatpush1.bf16.msra.mxu0 %v528
        %552 = vmatprep.subr.bf16.mxu0 0
        %553 = vmatpush1.bf16.msra.mxu0 %v529
        %554 = vmatprep.subr.bf16.mxu0 0
        %555 = vmatpush1.bf16.msra.mxu0 0
        %556 = vmatprep.subr.bf16.mxu0 0
        %557 = vmatpush1.bf16.msra.mxu0 0
        %558 = vmatprep.subr.bf16.mxu0 0
        %559 = vmatpush1.bf16.msra.mxu0 0
        %560 = vmatprep.subr.bf16.mxu0 0
        %561 = vmatpush1.bf16.msra.mxu0 0
        %562 = vmatprep.subr.bf16.mxu0 0
        %563 = vmatpush1.bf16.msra.mxu0 0
        %564 = vmatprep.subr.bf16.mxu0 0
        %565 = vmatpush1.bf16.msra.mxu0 0
        %566 = vmatprep.subr.bf16.mxu0 0
        %567 = vmatpush1.bf16.msra.mxu0 0
        %568 = vmatprep.subr.bf16.mxu0 0
        %569 = vmatpush1.bf16.msra.mxu0 0
        %570 = vmatprep.mubr.bf16.mxu0 0
        %571 = vmatmul.mubr.bf16.gmra.mrb[0].mxu0 %v473
        %v572 = vpop.f32.mrb[0].mxu0
        %v573 = vadd.f32 0.0, %v572
        %v574 = vpop.f32.mrb[0].mxu0
        %v575 = vpop.f32.mrb[0].mxu0
        %v576 = vpop.f32.mrb[0].mxu0
        %577 = vdwg.mxu0
        %v578 = vmax.f32 %v573, 0.0
        %579 = vst [vmem:[%s258] sm:$0xff] %v578
        %s580 = sand.u32 %s122, 1
        %s581 = scalar_lea.sflag [#allocation6], %s580
        %s582 = sand.u32 %s122, 1
        %s583 = smul.addr %s582, 8
        %s584 = scalar_lea.vmem [#allocation12], %s583
        // Predicated region
        $region53: #{tpu_custom_call.1} parent=35 // pred_check
          %p585 = pneg %p132
        $region54: #{tpu_custom_call.1} parent=35 // pred_check_branch
          %587 = sbr.rel (%p585) target = $region56
        $region55: #{tpu_custom_call.1} parent=35 // pred_region
          %s589 = ssub.s32 128, 128
          %590 = vsyncadd %s581, %s589
          %s591 = smul.addr %s25, 128
          %s592 = scalar_lea.hbm %s5, %s591
          %s594 = sshll.u32 %s584, 4
          %s595 = int_to_ptr.vmem [resolvable:$true] %s594
          %597 = dma.vmem_to_hbm [thread:$0]  %s595, 128, %s592, %s581
        $region56: #{tpu_custom_call.1} parent=35 // pred_fallthru
          _
      $region36: #{tpu_custom_call.1} parent=5 // pred_fallthru
        _
      %p598 = scmp.le.s32.totalorder 2, %s20
      // Predicated region
      $region57: #{tpu_custom_call.1} parent=5 // pred_check
        %p599 = pneg %p598
      $region58: #{tpu_custom_call.1} parent=5 // pred_check_branch
        %601 = sbr.rel (%p599) target = $region60
      $region59: #{tpu_custom_call.1} parent=5 // pred_region
        %s602 = ssub.s32 %s20, 2
        // Predicated region
        $region61: #{tpu_custom_call.1} parent=59 // pred_check
          %p603 = pneg %p138
        $region62: #{tpu_custom_call.1} parent=59 // pred_check_branch
          %605 = sbr.rel (%p603) target = $region64
        $region63: #{tpu_custom_call.1} parent=59 // pred_region
          %s606 = sand.u32 %s123, 1
          %s607 = scalar_lea.sflag [#allocation6], %s606
          %s608 = sand.u32 %s123, 1
          %s609 = smul.addr %s608, 8
          %s610 = scalar_lea.vmem [#allocation12], %s609
          %611 = dma.done %s607, 128
        $region64: #{tpu_custom_call.1} parent=59 // pred_fallthru
          _
      $region60: #{tpu_custom_call.1} parent=5 // pred_fallthru
        _
    $region6: #{tpu_custom_call.1} parent=1 // loop_footer
      %s24 = sadd.s32 1, %s20
    $region7: #{tpu_custom_call.1} parent=1 // loop_footer_branch
      %19 = sbr.rel target = $region3
    $region8: #{tpu_custom_call.1} parent=1 // loop_exit
      _
    %612 = vsyncpa [#allocation5], 1
    %s613 = scalar_lea.sflag [#allocation5], 1
    %614 = vsyncpa %s613, 1
    %615 = vsyncpa [#allocation8], 1
    %616 = vsyncpa [#allocation11], 1
    %617 = vsyncpa [#allocation6], 1
    %s618 = scalar_lea.sflag [#allocation6], 1
    %619 = vsyncpa %s618, 1

</llo_original>
